<compile_context>
chip_gen: v7x
topology: tpu7x:2x2x1
jax: 0.10.0
libtpu: 0.0.40
codegen_flags: <defaults>
</compile_context>

<pallas_src>
import functools

import jax
import jax.numpy as jnp
from jax.experimental import pallas as pl
from jax.experimental.pallas import tpu as pltpu


def _res2net_kernel(x_ref, w_ref, b_ref, g_ref, beta_ref, y_ref, yprev_ref,
                    *, ksize, dilation, eps):
    """One grid step == one Res2Net branch.

    x_ref    : (B, H, T)    current branch input chunk (T on lanes)
    w_ref    : (K, H, H)    conv weights of block s-1, layout (k, C_out, C_in)
    b_ref    : (H, 1)       conv bias
    g_ref    : (H, 1)       BN gamma
    beta_ref : (H, 1)       BN beta
    y_ref    : (B, H, T)    branch output
    yprev_ref: (B, H, T)    f32 scratch carrying y_{s-1} across grid steps
    """
    s = pl.program_id(0)
    B, H, T = x_ref.shape
    pad = dilation * (ksize - 1) // 2

    # ---- branch 0: identity passthrough, initialize the residual carry ----
    @pl.when(s == 0)
    def _():
        y_ref[...] = x_ref[...]
        yprev_ref[...] = jnp.zeros_like(yprev_ref)

    # ---- branches 1..S-1: TDNN(x_s [+ y_{s-1}]) ----
    @pl.when(s > 0)
    def _():
        # Residual add (y_prev is zero for s == 1, so this is exact).
        # NOTE: the residual is carried in f32 scratch (slightly higher
        # precision than re-reading a bf16 y_ref would give).
        inp = x_ref[...].astype(jnp.float32) + yprev_ref[...]

        # Dilated "same" conv: K lane-rolled taps (XLU) + VPU channel mixing.
        acc = jnp.zeros((B, H, T), jnp.float32)
        t_idx = jax.lax.broadcasted_iota(jnp.int32, (B, H, T), 2)
        for k in range(ksize):
            off = k * dilation - pad          # static Python int
            if off == 0:
                xs = inp
            else:
                rolled = pltpu.roll(inp, shift=(-off) % T, axis=2)
                valid = (t_idx + off >= 0) & (t_idx + off < T)
                xs = jnp.where(valid, rolled, 0.0)
            wk = w_ref[k].astype(jnp.float32)  # (H_out, H_in)
            # TODO(synk): for large H (>= 64) an im2col MXU path would beat
            # this unrolled VPU channel mix; H = C/scale is tiny here.
            for c in range(H):
                w_col = wk[:, c:c + 1].reshape(1, H, 1)     # (1, H_out, 1)
                acc = acc + w_col * xs[:, c:c + 1, :]        # (B, H_out, T)

        acc = acc + b_ref[...][None, :, :]                   # conv bias
        acc = jnp.maximum(acc, 0.0)                          # ReLU

        # BatchNorm1d, training-mode forward: per-channel stats over (B, T).
        mean = jnp.mean(acc, axis=(0, 2), keepdims=True)     # (1, H, 1)
        var = jnp.mean(jnp.square(acc - mean), axis=(0, 2), keepdims=True)
        y_i = (acc - mean) * jax.lax.rsqrt(var + eps)
        y_i = y_i * g_ref[...][None, :, :] + beta_ref[...][None, :, :]

        y_ref[...] = y_i.astype(y_ref.dtype)
        yprev_ref[...] = y_i                                  # carry for s+1


def res2net_block(x, W, b, g, beta, *, scale, ksize, dilation, eps=1e-5):
    """x: (B, C, T).  W: (scale-1, K, H, H) with (k, C_out, C_in) per block.
    b, g, beta: (scale-1, H, 1).  Returns (B, C, T)."""
    B, C, T = x.shape
    assert C % scale == 0
    H = C // scale
    # Symmetric "same" padding only matches PyTorch when this product is even.
    assert (dilation * (ksize - 1)) % 2 == 0, \
        "symmetric 'same' padding requires dilation*(ksize-1) to be even"

    # Pure reshape (no HBM transpose): channel chunks become the `scale` axis.
    x_r = x.reshape(B, scale, H, T)

    kernel = functools.partial(_res2net_kernel, ksize=ksize,
                               dilation=dilation, eps=eps)

    # VMEM budget: double-buffered x & y branch blocks + f32 carry scratch +
    # in-kernel f32 temporaries + params, with margin.  Clamp to a safe range.
    itemsize = jnp.dtype(x.dtype).itemsize
    branch_bytes = B * H * T * itemsize
    f32_branch = B * H * T * 4
    est = 4 * branch_bytes + 8 * f32_branch + W.size * 4 + (64 << 10)
    vmem_limit = int(min(max(2 * est, 16 << 20), 100 << 20))

    # TODO(synk): megacore ('parallel') sharding over B/T tiles would need a
    # two-pass BN (sum/sumsq accumulation + normalize); the branch chain and
    # global batch statistics keep this single-pass version sequential.
    grid_spec = pltpu.PrefetchScalarGridSpec(
        num_scalar_prefetch=0,
        grid=(scale,),
        in_specs=[
            pl.BlockSpec((B, None, H, T), lambda s: (0, s, 0, 0)),
            pl.BlockSpec((None, ksize, H, H),
                         lambda s: (jnp.maximum(s - 1, 0), 0, 0, 0)),
            pl.BlockSpec((None, H, 1), lambda s: (jnp.maximum(s - 1, 0), 0, 0)),
            pl.BlockSpec((None, H, 1), lambda s: (jnp.maximum(s - 1, 0), 0, 0)),
            pl.BlockSpec((None, H, 1), lambda s: (jnp.maximum(s - 1, 0), 0, 0)),
        ],
        out_specs=pl.BlockSpec((B, None, H, T), lambda s: (0, s, 0, 0)),
        scratch_shapes=[pltpu.VMEM((B, H, T), jnp.float32)],
    )

    y_r = pl.pallas_call(
        kernel,
        out_shape=jax.ShapeDtypeStruct((B, scale, H, T), x.dtype),
        grid_spec=grid_spec,
        compiler_params=pltpu.CompilerParams(
            dimension_semantics=("arbitrary",),
            vmem_limit_bytes=vmem_limit),
    )(x_r, W, b, g, beta)

    # Pure reshape back to (B, C, T) == torch.cat(y, dim=1).
    return y_r.reshape(B, C, T)


def _ref_forward(x, W, b, g, beta, *, scale, ksize, dilation, eps=1e-5):
    """Pure-JAX reference with identical math (for sanity checking)."""
    B, C, T = x.shape
    H = C // scale
    pad = dilation * (ksize - 1) // 2
    ys = []
    y_prev = None
    for i in range(scale):
        x_i = x[:, i * H:(i + 1) * H, :].transpose(0, 2, 1)   # (B, T, H)
        if i == 0:
            y_i = x_i
        else:
            inp = x_i if i == 1 else x_i + y_prev
            xp = jnp.pad(inp, ((0, 0), (pad, pad), (0, 0)))
            acc = jnp.zeros((B, T, H), jnp.float32)
            for k in range(ksize):
                sl = xp[:, k * dilation:k * dilation + T, :]   # (B, T, H_in)
                acc = acc + jnp.einsum('btc,dc->btd', sl, W[i - 1, k],
                                       precision=jax.lax.Precision.HIGHEST)
            acc = jnp.maximum(acc + b[i - 1, :, 0][None, None, :], 0.0)
            mean = jnp.mean(acc, axis=(0, 1), keepdims=True)
            var = jnp.mean(jnp.square(acc - mean), axis=(0, 1), keepdims=True)
            y_i = ((acc - mean) * jax.lax.rsqrt(var + eps)
                   * g[i - 1, :, 0][None, None, :]
                   + beta[i - 1, :, 0][None, None, :])
            y_prev = y_i
        ys.append(y_i.transpose(0, 2, 1))
    return jnp.concatenate(ys, axis=1)


if __name__ == "__main__":
    # Small shapes consistent with the module: in=out=32 channels, scale=4.
    B, C, T = 2, 32, 16
    SCALE, KSIZE, DIL = 4, 3, 2
    H = C // SCALE

    key = jax.random.PRNGKey(0)
    kx, kw, kb, kg, kbeta = jax.random.split(key, 5)

    x = jax.random.normal(kx, (B, C, T), jnp.float32)

    # Synthetic parameters for the scale-1 TDNN blocks.
    # Conv weight layout: (block, tap k, C_out, C_in) == torch w[co, ci, k].
    W = 0.2 * jax.random.normal(kw, (SCALE - 1, KSIZE, H, H), jnp.float32)
    b = 0.1 * jax.random.normal(kb, (SCALE - 1, H, 1), jnp.float32)
    g = 1.0 + 0.1 * jax.random.normal(kg, (SCALE - 1, H, 1), jnp.float32)
    beta = 0.1 * jax.random.normal(kbeta, (SCALE - 1, H, 1), jnp.float32)

    y = res2net_block(x, W, b, g, beta, scale=SCALE, ksize=KSIZE, dilation=DIL)
    y = jax.block_until_ready(y)

    y_ref = _ref_forward(x, W, b, g, beta, scale=SCALE, ksize=KSIZE, dilation=DIL)
    assert y.shape == (B, C, T)
    assert jnp.allclose(y, y_ref, atol=1e-4, rtol=1e-4), "mismatch vs JAX reference"

    print("KERNEL_OK")
</pallas_src>

<mosaic_0001>
module attributes {stable_mosaic.version = 11 : i64} {
  func.func @_res2net_kernel(%arg0: i32, %arg1: memref<2x1x8x16xf32, #tpu.memory_space<vmem>>, %arg2: memref<1x3x8x8xf32, #tpu.memory_space<vmem>>, %arg3: memref<1x8x1xf32, #tpu.memory_space<vmem>>, %arg4: memref<1x8x1xf32, #tpu.memory_space<vmem>>, %arg5: memref<1x8x1xf32, #tpu.memory_space<vmem>>, %arg6: memref<2x1x8x16xf32, #tpu.memory_space<vmem>>, %arg7: memref<2x8x16xf32, #tpu.memory_space<vmem>>) attributes {dimension_semantics = [#tpu.dimension_semantics<arbitrary>], iteration_bounds = array<i64: 4>, scalar_prefetch = 0 : i64, scratch_operands = 1 : i64, tpu.core_type = #tpu.core_type<tc>, window_params = [{transform_indices = @transform_0, window_bounds = array<i64: 2, 1, 8, 16>}, {transform_indices = @transform_1, window_bounds = array<i64: 1, 3, 8, 8>}, {transform_indices = @transform_2, window_bounds = array<i64: 1, 8, 1>}, {transform_indices = @transform_3, window_bounds = array<i64: 1, 8, 1>}, {transform_indices = @transform_4, window_bounds = array<i64: 1, 8, 1>}, {transform_indices = @transform_5, window_bounds = array<i64: 2, 1, 8, 16>}]} {
    %c0_i32 = arith.constant 0 : i32
    %0 = arith.cmpi eq, %arg0, %c0_i32 : i32
    %1 = arith.extui %0 : i1 to i32
    %c0_i32_0 = arith.constant 0 : i32
    %2 = arith.cmpi ne, %1, %c0_i32_0 : i32
    scf.if %2 {
      %c0 = arith.constant 0 : index
      %c0_3 = arith.constant 0 : index
      %c0_4 = arith.constant 0 : index
      %c0_5 = arith.constant 0 : index
      %6 = vector.load %arg1[%c0, %c0_3, %c0_4, %c0_5] : memref<2x1x8x16xf32, #tpu.memory_space<vmem>>, vector<2x1x8x16xf32>
      %7 = vector.shape_cast %6 : vector<2x1x8x16xf32> to vector<2x8x16xf32>
      %c0_6 = arith.constant 0 : index
      %c0_7 = arith.constant 0 : index
      %c0_8 = arith.constant 0 : index
      %c0_9 = arith.constant 0 : index
      %8 = vector.load %arg6[%c0_6, %c0_7, %c0_8, %c0_9] : memref<2x1x8x16xf32, #tpu.memory_space<vmem>>, vector<2x1x8x16xf32>
      %9 = vector.shape_cast %8 : vector<2x1x8x16xf32> to vector<2x8x16xf32>
      %10 = vector.shape_cast %7 : vector<2x8x16xf32> to vector<2x1x8x16xf32>
      tpu.vector_store %arg6[%c0_6, %c0_7, %c0_8, %c0_9], %10 {strides = array<i32>} : memref<2x1x8x16xf32, #tpu.memory_space<vmem>>, vector<2x1x8x16xf32>,
      %cst = arith.constant 0.000000e+00 : f32
      %11 = vector.broadcast %cst : f32 to vector<2x8x16xf32>
      %c0_10 = arith.constant 0 : index
      %c0_11 = arith.constant 0 : index
      %c0_12 = arith.constant 0 : index
      %12 = vector.load %arg7[%c0_10, %c0_11, %c0_12] : memref<2x8x16xf32, #tpu.memory_space<vmem>>, vector<2x8x16xf32>
      tpu.vector_store %arg7[%c0_10, %c0_11, %c0_12], %11 {strides = array<i32>} : memref<2x8x16xf32, #tpu.memory_space<vmem>>, vector<2x8x16xf32>,
    } else {
    }
    %c0_i32_1 = arith.constant 0 : i32
    %3 = arith.cmpi sgt, %arg0, %c0_i32_1 : i32
    %4 = arith.extui %3 : i1 to i32
    %c0_i32_2 = arith.constant 0 : i32
    %5 = arith.cmpi ne, %4, %c0_i32_2 : i32
    scf.if %5 {
      %c0 = arith.constant 0 : index
      %c0_3 = arith.constant 0 : index
      %c0_4 = arith.constant 0 : index
      %c0_5 = arith.constant 0 : index
      %6 = vector.load %arg1[%c0, %c0_3, %c0_4, %c0_5] : memref<2x1x8x16xf32, #tpu.memory_space<vmem>>, vector<2x1x8x16xf32>
      %7 = vector.shape_cast %6 : vector<2x1x8x16xf32> to vector<2x8x16xf32>
      %c0_6 = arith.constant 0 : index
      %c0_7 = arith.constant 0 : index
      %c0_8 = arith.constant 0 : index
      %8 = vector.load %arg7[%c0_6, %c0_7, %c0_8] : memref<2x8x16xf32, #tpu.memory_space<vmem>>, vector<2x8x16xf32>
      %9 = arith.addf %7, %8 : vector<2x8x16xf32>
      %cst = arith.constant 0.000000e+00 : f32
      %10 = vector.broadcast %cst : f32 to vector<2x8x16xf32>
      %11 = tpu.iota {dimensions = array<i32: 2>} : vector<2x8x16xi32>
      %c2_i32 = arith.constant 2 : i32
      %12 = tpu.dynamic_rotate %9 by %c2_i32 dim 2 : vector<2x8x16xf32>, i32 -> vector<2x8x16xf32>
      %c-2_i32 = arith.constant -2 : i32
      %13 = vector.broadcast %c-2_i32 : i32 to vector<2x8x16xi32>
      %14 = arith.addi %11, %13 : vector<2x8x16xi32>
      %c0_i32_9 = arith.constant 0 : i32
      %15 = vector.broadcast %c0_i32_9 : i32 to vector<2x8x16xi32>
      %16 = arith.cmpi sge, %14, %15 : vector<2x8x16xi32>
      %c-2_i32_10 = arith.constant -2 : i32
      %17 = vector.broadcast %c-2_i32_10 : i32 to vector<2x8x16xi32>
      %18 = arith.addi %11, %17 : vector<2x8x16xi32>
      %c16_i32 = arith.constant 16 : i32
      %19 = vector.broadcast %c16_i32 : i32 to vector<2x8x16xi32>
      %20 = arith.cmpi slt, %18, %19 : vector<2x8x16xi32>
      %21 = arith.andi %16, %20 : vector<2x8x16xi1>
      %cst_11 = arith.constant 0.000000e+00 : f32
      %22 = vector.broadcast %cst_11 : f32 to vector<2x8x16xf32>
      %23 = arith.select %21, %12, %22 : vector<2x8x16xi1>, vector<2x8x16xf32>
      %c0_12 = arith.constant 0 : index
      %c0_13 = arith.constant 0 : index
      %c0_14 = arith.constant 0 : index
      %c0_15 = arith.constant 0 : index
      %24 = vector.load %arg2[%c0_12, %c0_13, %c0_14, %c0_15] : memref<1x3x8x8xf32, #tpu.memory_space<vmem>>, vector<1x1x8x8xf32>
      %25 = vector.shape_cast %24 : vector<1x1x8x8xf32> to vector<8x8xf32>
      %26 = vector.extract_strided_slice %25 {offsets = [0, 0], sizes = [8, 1], strides = [1, 1]} : vector<8x8xf32> to vector<8x1xf32>
      %27 = vector.shape_cast %26 : vector<8x1xf32> to vector<1x8x1xf32>
      %28 = vector.extract_strided_slice %23 {offsets = [0, 0, 0], sizes = [2, 1, 16], strides = [1, 1, 1]} : vector<2x8x16xf32> to vector<2x1x16xf32>
      %29 = vector.broadcast %27 : vector<1x8x1xf32> to vector<2x8x16xf32>
      %30 = vector.broadcast %28 : vector<2x1x16xf32> to vector<2x8x16xf32>
      %31 = arith.mulf %29, %30 : vector<2x8x16xf32>
      %32 = arith.addf %10, %31 : vector<2x8x16xf32>
      %33 = vector.extract_strided_slice %25 {offsets = [0, 1], sizes = [8, 1], strides = [1, 1]} : vector<8x8xf32> to vector<8x1xf32>
      %34 = vector.shape_cast %33 : vector<8x1xf32> to vector<1x8x1xf32>
      %35 = vector.extract_strided_slice %23 {offsets = [0, 1, 0], sizes = [2, 1, 16], strides = [1, 1, 1]} : vector<2x8x16xf32> to vector<2x1x16xf32>
      %36 = vector.broadcast %34 : vector<1x8x1xf32> to vector<2x8x16xf32>
      %37 = vector.broadcast %35 : vector<2x1x16xf32> to vector<2x8x16xf32>
      %38 = arith.mulf %36, %37 : vector<2x8x16xf32>
      %39 = arith.addf %32, %38 : vector<2x8x16xf32>
      %40 = vector.extract_strided_slice %25 {offsets = [0, 2], sizes = [8, 1], strides = [1, 1]} : vector<8x8xf32> to vector<8x1xf32>
      %41 = vector.shape_cast %40 : vector<8x1xf32> to vector<1x8x1xf32>
      %42 = vector.extract_strided_slice %23 {offsets = [0, 2, 0], sizes = [2, 1, 16], strides = [1, 1, 1]} : vector<2x8x16xf32> to vector<2x1x16xf32>
      %43 = vector.broadcast %41 : vector<1x8x1xf32> to vector<2x8x16xf32>
      %44 = vector.broadcast %42 : vector<2x1x16xf32> to vector<2x8x16xf32>
      %45 = arith.mulf %43, %44 : vector<2x8x16xf32>
      %46 = arith.addf %39, %45 : vector<2x8x16xf32>
      %47 = vector.extract_strided_slice %25 {offsets = [0, 3], sizes = [8, 1], strides = [1, 1]} : vector<8x8xf32> to vector<8x1xf32>
      %48 = vector.shape_cast %47 : vector<8x1xf32> to vector<1x8x1xf32>
      %49 = vector.extract_strided_slice %23 {offsets = [0, 3, 0], sizes = [2, 1, 16], strides = [1, 1, 1]} : vector<2x8x16xf32> to vector<2x1x16xf32>
      %50 = vector.broadcast %48 : vector<1x8x1xf32> to vector<2x8x16xf32>
      %51 = vector.broadcast %49 : vector<2x1x16xf32> to vector<2x8x16xf32>
      %52 = arith.mulf %50, %51 : vector<2x8x16xf32>
      %53 = arith.addf %46, %52 : vector<2x8x16xf32>
      %54 = vector.extract_strided_slice %25 {offsets = [0, 4], sizes = [8, 1], strides = [1, 1]} : vector<8x8xf32> to vector<8x1xf32>
      %55 = vector.shape_cast %54 : vector<8x1xf32> to vector<1x8x1xf32>
      %56 = vector.extract_strided_slice %23 {offsets = [0, 4, 0], sizes = [2, 1, 16], strides = [1, 1, 1]} : vector<2x8x16xf32> to vector<2x1x16xf32>
      %57 = vector.broadcast %55 : vector<1x8x1xf32> to vector<2x8x16xf32>
      %58 = vector.broadcast %56 : vector<2x1x16xf32> to vector<2x8x16xf32>
      %59 = arith.mulf %57, %58 : vector<2x8x16xf32>
      %60 = arith.addf %53, %59 : vector<2x8x16xf32>
      %61 = vector.extract_strided_slice %25 {offsets = [0, 5], sizes = [8, 1], strides = [1, 1]} : vector<8x8xf32> to vector<8x1xf32>
      %62 = vector.shape_cast %61 : vector<8x1xf32> to vector<1x8x1xf32>
      %63 = vector.extract_strided_slice %23 {offsets = [0, 5, 0], sizes = [2, 1, 16], strides = [1, 1, 1]} : vector<2x8x16xf32> to vector<2x1x16xf32>
      %64 = vector.broadcast %62 : vector<1x8x1xf32> to vector<2x8x16xf32>
      %65 = vector.broadcast %63 : vector<2x1x16xf32> to vector<2x8x16xf32>
      %66 = arith.mulf %64, %65 : vector<2x8x16xf32>
      %67 = arith.addf %60, %66 : vector<2x8x16xf32>
      %68 = vector.extract_strided_slice %25 {offsets = [0, 6], sizes = [8, 1], strides = [1, 1]} : vector<8x8xf32> to vector<8x1xf32>
      %69 = vector.shape_cast %68 : vector<8x1xf32> to vector<1x8x1xf32>
      %70 = vector.extract_strided_slice %23 {offsets = [0, 6, 0], sizes = [2, 1, 16], strides = [1, 1, 1]} : vector<2x8x16xf32> to vector<2x1x16xf32>
      %71 = vector.broadcast %69 : vector<1x8x1xf32> to vector<2x8x16xf32>
      %72 = vector.broadcast %70 : vector<2x1x16xf32> to vector<2x8x16xf32>
      %73 = arith.mulf %71, %72 : vector<2x8x16xf32>
      %74 = arith.addf %67, %73 : vector<2x8x16xf32>
      %75 = vector.extract_strided_slice %25 {offsets = [0, 7], sizes = [8, 1], strides = [1, 1]} : vector<8x8xf32> to vector<8x1xf32>
      %76 = vector.shape_cast %75 : vector<8x1xf32> to vector<1x8x1xf32>
      %77 = vector.extract_strided_slice %23 {offsets = [0, 7, 0], sizes = [2, 1, 16], strides = [1, 1, 1]} : vector<2x8x16xf32> to vector<2x1x16xf32>
      %78 = vector.broadcast %76 : vector<1x8x1xf32> to vector<2x8x16xf32>
      %79 = vector.broadcast %77 : vector<2x1x16xf32> to vector<2x8x16xf32>
      %80 = arith.mulf %78, %79 : vector<2x8x16xf32>
      %81 = arith.addf %74, %80 : vector<2x8x16xf32>
      %c0_16 = arith.constant 0 : index
      %c1 = arith.constant 1 : index
      %c0_17 = arith.constant 0 : index
      %c0_18 = arith.constant 0 : index
      %82 = vector.load %arg2[%c0_16, %c1, %c0_17, %c0_18] : memref<1x3x8x8xf32, #tpu.memory_space<vmem>>, vector<1x1x8x8xf32>
      %83 = vector.shape_cast %82 : vector<1x1x8x8xf32> to vector<8x8xf32>
      %84 = vector.extract_strided_slice %83 {offsets = [0, 0], sizes = [8, 1], strides = [1, 1]} : vector<8x8xf32> to vector<8x1xf32>
      %85 = vector.shape_cast %84 : vector<8x1xf32> to vector<1x8x1xf32>
      %86 = vector.extract_strided_slice %9 {offsets = [0, 0, 0], sizes = [2, 1, 16], strides = [1, 1, 1]} : vector<2x8x16xf32> to vector<2x1x16xf32>
      %87 = vector.broadcast %85 : vector<1x8x1xf32> to vector<2x8x16xf32>
      %88 = vector.broadcast %86 : vector<2x1x16xf32> to vector<2x8x16xf32>
      %89 = arith.mulf %87, %88 : vector<2x8x16xf32>
      %90 = arith.addf %81, %89 : vector<2x8x16xf32>
      %91 = vector.extract_strided_slice %83 {offsets = [0, 1], sizes = [8, 1], strides = [1, 1]} : vector<8x8xf32> to vector<8x1xf32>
      %92 = vector.shape_cast %91 : vector<8x1xf32> to vector<1x8x1xf32>
      %93 = vector.extract_strided_slice %9 {offsets = [0, 1, 0], sizes = [2, 1, 16], strides = [1, 1, 1]} : vector<2x8x16xf32> to vector<2x1x16xf32>
      %94 = vector.broadcast %92 : vector<1x8x1xf32> to vector<2x8x16xf32>
      %95 = vector.broadcast %93 : vector<2x1x16xf32> to vector<2x8x16xf32>
      %96 = arith.mulf %94, %95 : vector<2x8x16xf32>
      %97 = arith.addf %90, %96 : vector<2x8x16xf32>
      %98 = vector.extract_strided_slice %83 {offsets = [0, 2], sizes = [8, 1], strides = [1, 1]} : vector<8x8xf32> to vector<8x1xf32>
      %99 = vector.shape_cast %98 : vector<8x1xf32> to vector<1x8x1xf32>
      %100 = vector.extract_strided_slice %9 {offsets = [0, 2, 0], sizes = [2, 1, 16], strides = [1, 1, 1]} : vector<2x8x16xf32> to vector<2x1x16xf32>
      %101 = vector.broadcast %99 : vector<1x8x1xf32> to vector<2x8x16xf32>
      %102 = vector.broadcast %100 : vector<2x1x16xf32> to vector<2x8x16xf32>
      %103 = arith.mulf %101, %102 : vector<2x8x16xf32>
      %104 = arith.addf %97, %103 : vector<2x8x16xf32>
      %105 = vector.extract_strided_slice %83 {offsets = [0, 3], sizes = [8, 1], strides = [1, 1]} : vector<8x8xf32> to vector<8x1xf32>
      %106 = vector.shape_cast %105 : vector<8x1xf32> to vector<1x8x1xf32>
      %107 = vector.extract_strided_slice %9 {offsets = [0, 3, 0], sizes = [2, 1, 16], strides = [1, 1, 1]} : vector<2x8x16xf32> to vector<2x1x16xf32>
      %108 = vector.broadcast %106 : vector<1x8x1xf32> to vector<2x8x16xf32>
      %109 = vector.broadcast %107 : vector<2x1x16xf32> to vector<2x8x16xf32>
      %110 = arith.mulf %108, %109 : vector<2x8x16xf32>
      %111 = arith.addf %104, %110 : vector<2x8x16xf32>
      %112 = vector.extract_strided_slice %83 {offsets = [0, 4], sizes = [8, 1], strides = [1, 1]} : vector<8x8xf32> to vector<8x1xf32>
      %113 = vector.shape_cast %112 : vector<8x1xf32> to vector<1x8x1xf32>
      %114 = vector.extract_strided_slice %9 {offsets = [0, 4, 0], sizes = [2, 1, 16], strides = [1, 1, 1]} : vector<2x8x16xf32> to vector<2x1x16xf32>
      %115 = vector.broadcast %113 : vector<1x8x1xf32> to vector<2x8x16xf32>
      %116 = vector.broadcast %114 : vector<2x1x16xf32> to vector<2x8x16xf32>
      %117 = arith.mulf %115, %116 : vector<2x8x16xf32>
      %118 = arith.addf %111, %117 : vector<2x8x16xf32>
      %119 = vector.extract_strided_slice %83 {offsets = [0, 5], sizes = [8, 1], strides = [1, 1]} : vector<8x8xf32> to vector<8x1xf32>
      %120 = vector.shape_cast %119 : vector<8x1xf32> to vector<1x8x1xf32>
      %121 = vector.extract_strided_slice %9 {offsets = [0, 5, 0], sizes = [2, 1, 16], strides = [1, 1, 1]} : vector<2x8x16xf32> to vector<2x1x16xf32>
      %122 = vector.broadcast %120 : vector<1x8x1xf32> to vector<2x8x16xf32>
      %123 = vector.broadcast %121 : vector<2x1x16xf32> to vector<2x8x16xf32>
      %124 = arith.mulf %122, %123 : vector<2x8x16xf32>
      %125 = arith.addf %118, %124 : vector<2x8x16xf32>
      %126 = vector.extract_strided_slice %83 {offsets = [0, 6], sizes = [8, 1], strides = [1, 1]} : vector<8x8xf32> to vector<8x1xf32>
      %127 = vector.shape_cast %126 : vector<8x1xf32> to vector<1x8x1xf32>
      %128 = vector.extract_strided_slice %9 {offsets = [0, 6, 0], sizes = [2, 1, 16], strides = [1, 1, 1]} : vector<2x8x16xf32> to vector<2x1x16xf32>
      %129 = vector.broadcast %127 : vector<1x8x1xf32> to vector<2x8x16xf32>
      %130 = vector.broadcast %128 : vector<2x1x16xf32> to vector<2x8x16xf32>
      %131 = arith.mulf %129, %130 : vector<2x8x16xf32>
      %132 = arith.addf %125, %131 : vector<2x8x16xf32>
      %133 = vector.extract_strided_slice %83 {offsets = [0, 7], sizes = [8, 1], strides = [1, 1]} : vector<8x8xf32> to vector<8x1xf32>
      %134 = vector.shape_cast %133 : vector<8x1xf32> to vector<1x8x1xf32>
      %135 = vector.extract_strided_slice %9 {offsets = [0, 7, 0], sizes = [2, 1, 16], strides = [1, 1, 1]} : vector<2x8x16xf32> to vector<2x1x16xf32>
      %136 = vector.broadcast %134 : vector<1x8x1xf32> to vector<2x8x16xf32>
      %137 = vector.broadcast %135 : vector<2x1x16xf32> to vector<2x8x16xf32>
      %138 = arith.mulf %136, %137 : vector<2x8x16xf32>
      %139 = arith.addf %132, %138 : vector<2x8x16xf32>
      %c14_i32 = arith.constant 14 : i32
      %140 = tpu.dynamic_rotate %9 by %c14_i32 dim 2 : vector<2x8x16xf32>, i32 -> vector<2x8x16xf32>
      %c2_i32_19 = arith.constant 2 : i32
      %141 = vector.broadcast %c2_i32_19 : i32 to vector<2x8x16xi32>
      %142 = arith.addi %11, %141 : vector<2x8x16xi32>
      %c0_i32_20 = arith.constant 0 : i32
      %143 = vector.broadcast %c0_i32_20 : i32 to vector<2x8x16xi32>
      %144 = arith.cmpi sge, %142, %143 : vector<2x8x16xi32>
      %c2_i32_21 = arith.constant 2 : i32
      %145 = vector.broadcast %c2_i32_21 : i32 to vector<2x8x16xi32>
      %146 = arith.addi %11, %145 : vector<2x8x16xi32>
      %c16_i32_22 = arith.constant 16 : i32
      %147 = vector.broadcast %c16_i32_22 : i32 to vector<2x8x16xi32>
      %148 = arith.cmpi slt, %146, %147 : vector<2x8x16xi32>
      %149 = arith.andi %144, %148 : vector<2x8x16xi1>
      %cst_23 = arith.constant 0.000000e+00 : f32
      %150 = vector.broadcast %cst_23 : f32 to vector<2x8x16xf32>
      %151 = arith.select %149, %140, %150 : vector<2x8x16xi1>, vector<2x8x16xf32>
      %c0_24 = arith.constant 0 : index
      %c2 = arith.constant 2 : index
      %c0_25 = arith.constant 0 : index
      %c0_26 = arith.constant 0 : index
      %152 = vector.load %arg2[%c0_24, %c2, %c0_25, %c0_26] : memref<1x3x8x8xf32, #tpu.memory_space<vmem>>, vector<1x1x8x8xf32>
      %153 = vector.shape_cast %152 : vector<1x1x8x8xf32> to vector<8x8xf32>
      %154 = vector.extract_strided_slice %153 {offsets = [0, 0], sizes = [8, 1], strides = [1, 1]} : vector<8x8xf32> to vector<8x1xf32>
      %155 = vector.shape_cast %154 : vector<8x1xf32> to vector<1x8x1xf32>
      %156 = vector.extract_strided_slice %151 {offsets = [0, 0, 0], sizes = [2, 1, 16], strides = [1, 1, 1]} : vector<2x8x16xf32> to vector<2x1x16xf32>
      %157 = vector.broadcast %155 : vector<1x8x1xf32> to vector<2x8x16xf32>
      %158 = vector.broadcast %156 : vector<2x1x16xf32> to vector<2x8x16xf32>
      %159 = arith.mulf %157, %158 : vector<2x8x16xf32>
      %160 = arith.addf %139, %159 : vector<2x8x16xf32>
      %161 = vector.extract_strided_slice %153 {offsets = [0, 1], sizes = [8, 1], strides = [1, 1]} : vector<8x8xf32> to vector<8x1xf32>
      %162 = vector.shape_cast %161 : vector<8x1xf32> to vector<1x8x1xf32>
      %163 = vector.extract_strided_slice %151 {offsets = [0, 1, 0], sizes = [2, 1, 16], strides = [1, 1, 1]} : vector<2x8x16xf32> to vector<2x1x16xf32>
      %164 = vector.broadcast %162 : vector<1x8x1xf32> to vector<2x8x16xf32>
      %165 = vector.broadcast %163 : vector<2x1x16xf32> to vector<2x8x16xf32>
      %166 = arith.mulf %164, %165 : vector<2x8x16xf32>
      %167 = arith.addf %160, %166 : vector<2x8x16xf32>
      %168 = vector.extract_strided_slice %153 {offsets = [0, 2], sizes = [8, 1], strides = [1, 1]} : vector<8x8xf32> to vector<8x1xf32>
      %169 = vector.shape_cast %168 : vector<8x1xf32> to vector<1x8x1xf32>
      %170 = vector.extract_strided_slice %151 {offsets = [0, 2, 0], sizes = [2, 1, 16], strides = [1, 1, 1]} : vector<2x8x16xf32> to vector<2x1x16xf32>
      %171 = vector.broadcast %169 : vector<1x8x1xf32> to vector<2x8x16xf32>
      %172 = vector.broadcast %170 : vector<2x1x16xf32> to vector<2x8x16xf32>
      %173 = arith.mulf %171, %172 : vector<2x8x16xf32>
      %174 = arith.addf %167, %173 : vector<2x8x16xf32>
      %175 = vector.extract_strided_slice %153 {offsets = [0, 3], sizes = [8, 1], strides = [1, 1]} : vector<8x8xf32> to vector<8x1xf32>
      %176 = vector.shape_cast %175 : vector<8x1xf32> to vector<1x8x1xf32>
      %177 = vector.extract_strided_slice %151 {offsets = [0, 3, 0], sizes = [2, 1, 16], strides = [1, 1, 1]} : vector<2x8x16xf32> to vector<2x1x16xf32>
      %178 = vector.broadcast %176 : vector<1x8x1xf32> to vector<2x8x16xf32>
      %179 = vector.broadcast %177 : vector<2x1x16xf32> to vector<2x8x16xf32>
      %180 = arith.mulf %178, %179 : vector<2x8x16xf32>
      %181 = arith.addf %174, %180 : vector<2x8x16xf32>
      %182 = vector.extract_strided_slice %153 {offsets = [0, 4], sizes = [8, 1], strides = [1, 1]} : vector<8x8xf32> to vector<8x1xf32>
      %183 = vector.shape_cast %182 : vector<8x1xf32> to vector<1x8x1xf32>
      %184 = vector.extract_strided_slice %151 {offsets = [0, 4, 0], sizes = [2, 1, 16], strides = [1, 1, 1]} : vector<2x8x16xf32> to vector<2x1x16xf32>
      %185 = vector.broadcast %183 : vector<1x8x1xf32> to vector<2x8x16xf32>
      %186 = vector.broadcast %184 : vector<2x1x16xf32> to vector<2x8x16xf32>
      %187 = arith.mulf %185, %186 : vector<2x8x16xf32>
      %188 = arith.addf %181, %187 : vector<2x8x16xf32>
      %189 = vector.extract_strided_slice %153 {offsets = [0, 5], sizes = [8, 1], strides = [1, 1]} : vector<8x8xf32> to vector<8x1xf32>
      %190 = vector.shape_cast %189 : vector<8x1xf32> to vector<1x8x1xf32>
      %191 = vector.extract_strided_slice %151 {offsets = [0, 5, 0], sizes = [2, 1, 16], strides = [1, 1, 1]} : vector<2x8x16xf32> to vector<2x1x16xf32>
      %192 = vector.broadcast %190 : vector<1x8x1xf32> to vector<2x8x16xf32>
      %193 = vector.broadcast %191 : vector<2x1x16xf32> to vector<2x8x16xf32>
      %194 = arith.mulf %192, %193 : vector<2x8x16xf32>
      %195 = arith.addf %188, %194 : vector<2x8x16xf32>
      %196 = vector.extract_strided_slice %153 {offsets = [0, 6], sizes = [8, 1], strides = [1, 1]} : vector<8x8xf32> to vector<8x1xf32>
      %197 = vector.shape_cast %196 : vector<8x1xf32> to vector<1x8x1xf32>
      %198 = vector.extract_strided_slice %151 {offsets = [0, 6, 0], sizes = [2, 1, 16], strides = [1, 1, 1]} : vector<2x8x16xf32> to vector<2x1x16xf32>
      %199 = vector.broadcast %197 : vector<1x8x1xf32> to vector<2x8x16xf32>
      %200 = vector.broadcast %198 : vector<2x1x16xf32> to vector<2x8x16xf32>
      %201 = arith.mulf %199, %200 : vector<2x8x16xf32>
      %202 = arith.addf %195, %201 : vector<2x8x16xf32>
      %203 = vector.extract_strided_slice %153 {offsets = [0, 7], sizes = [8, 1], strides = [1, 1]} : vector<8x8xf32> to vector<8x1xf32>
      %204 = vector.shape_cast %203 : vector<8x1xf32> to vector<1x8x1xf32>
      %205 = vector.extract_strided_slice %151 {offsets = [0, 7, 0], sizes = [2, 1, 16], strides = [1, 1, 1]} : vector<2x8x16xf32> to vector<2x1x16xf32>
      %206 = vector.broadcast %204 : vector<1x8x1xf32> to vector<2x8x16xf32>
      %207 = vector.broadcast %205 : vector<2x1x16xf32> to vector<2x8x16xf32>
      %208 = arith.mulf %206, %207 : vector<2x8x16xf32>
      %209 = arith.addf %202, %208 : vector<2x8x16xf32>
      %c0_27 = arith.constant 0 : index
      %c0_28 = arith.constant 0 : index
      %c0_29 = arith.constant 0 : index
      %210 = vector.load %arg3[%c0_27, %c0_28, %c0_29] : memref<1x8x1xf32, #tpu.memory_space<vmem>>, vector<1x8x1xf32>
      %211 = vector.shape_cast %210 : vector<1x8x1xf32> to vector<8x1xf32>
      %212 = vector.shape_cast %211 : vector<8x1xf32> to vector<1x8x1xf32>
      %213 = vector.broadcast %212 : vector<1x8x1xf32> to vector<2x8x16xf32>
      %214 = arith.addf %209, %213 : vector<2x8x16xf32>
      %cst_30 = arith.constant 0.000000e+00 : f32
      %215 = vector.broadcast %cst_30 : f32 to vector<2x8x16xf32>
      %216 = arith.maximumf %214, %215 : vector<2x8x16xf32>
      %cst_31 = arith.constant dense<0.000000e+00> : vector<8xf32>
      %217 = vector.multi_reduction <add>, %216, %cst_31 [0, 2] : vector<2x8x16xf32> to vector<8xf32>
      %218 = vector.shape_cast %217 : vector<8xf32> to vector<1x8x1xf32>
      %cst_32 = arith.constant 3.200000e+01 : f32
      %219 = vector.broadcast %cst_32 : f32 to vector<1x8x1xf32>
      %220 = arith.divf %218, %219 : vector<1x8x1xf32>
      %221 = vector.broadcast %220 : vector<1x8x1xf32> to vector<2x8x16xf32>
      %222 = arith.subf %216, %221 : vector<2x8x16xf32>
      %223 = arith.mulf %222, %222 : vector<2x8x16xf32>
      %cst_33 = arith.constant dense<0.000000e+00> : vector<8xf32>
      %224 = vector.multi_reduction <add>, %223, %cst_33 [0, 2] : vector<2x8x16xf32> to vector<8xf32>
      %225 = vector.shape_cast %224 : vector<8xf32> to vector<1x8x1xf32>
      %cst_34 = arith.constant 3.200000e+01 : f32
      %226 = vector.broadcast %cst_34 : f32 to vector<1x8x1xf32>
      %227 = arith.divf %225, %226 : vector<1x8x1xf32>
      %228 = vector.broadcast %220 : vector<1x8x1xf32> to vector<2x8x16xf32>
      %229 = arith.subf %216, %228 : vector<2x8x16xf32>
      %cst_35 = arith.constant 9.99999974E-6 : f32
      %230 = vector.broadcast %cst_35 : f32 to vector<1x8x1xf32>
      %231 = arith.addf %227, %230 : vector<1x8x1xf32>
      %232 = math.rsqrt %231 : vector<1x8x1xf32>
      %233 = vector.broadcast %232 : vector<1x8x1xf32> to vector<2x8x16xf32>
      %234 = arith.mulf %229, %233 : vector<2x8x16xf32>
      %c0_36 = arith.constant 0 : index
      %c0_37 = arith.constant 0 : index
      %c0_38 = arith.constant 0 : index
      %235 = vector.load %arg4[%c0_36, %c0_37, %c0_38] : memref<1x8x1xf32, #tpu.memory_space<vmem>>, vector<1x8x1xf32>
      %236 = vector.shape_cast %235 : vector<1x8x1xf32> to vector<8x1xf32>
      %237 = vector.shape_cast %236 : vector<8x1xf32> to vector<1x8x1xf32>
      %238 = vector.broadcast %237 : vector<1x8x1xf32> to vector<2x8x16xf32>
      %239 = arith.mulf %234, %238 : vector<2x8x16xf32>
      %c0_39 = arith.constant 0 : index
      %c0_40 = arith.constant 0 : index
      %c0_41 = arith.constant 0 : index
      %240 = vector.load %arg5[%c0_39, %c0_40, %c0_41] : memref<1x8x1xf32, #tpu.memory_space<vmem>>, vector<1x8x1xf32>
      %241 = vector.shape_cast %240 : vector<1x8x1xf32> to vector<8x1xf32>
      %242 = vector.shape_cast %241 : vector<8x1xf32> to vector<1x8x1xf32>
      %243 = vector.broadcast %242 : vector<1x8x1xf32> to vector<2x8x16xf32>
      %244 = arith.addf %239, %243 : vector<2x8x16xf32>
      %c0_42 = arith.constant 0 : index
      %c0_43 = arith.constant 0 : index
      %c0_44 = arith.constant 0 : index
      %c0_45 = arith.constant 0 : index
      %245 = vector.load %arg6[%c0_42, %c0_43, %c0_44, %c0_45] : memref<2x1x8x16xf32, #tpu.memory_space<vmem>>, vector<2x1x8x16xf32>
      %246 = vector.shape_cast %245 : vector<2x1x8x16xf32> to vector<2x8x16xf32>
      %247 = vector.shape_cast %244 : vector<2x8x16xf32> to vector<2x1x8x16xf32>
      tpu.vector_store %arg6[%c0_42, %c0_43, %c0_44, %c0_45], %247 {strides = array<i32>} : memref<2x1x8x16xf32, #tpu.memory_space<vmem>>, vector<2x1x8x16xf32>,
      %c0_46 = arith.constant 0 : index
      %c0_47 = arith.constant 0 : index
      %c0_48 = arith.constant 0 : index
      %248 = vector.load %arg7[%c0_46, %c0_47, %c0_48] : memref<2x8x16xf32, #tpu.memory_space<vmem>>, vector<2x8x16xf32>
      tpu.vector_store %arg7[%c0_46, %c0_47, %c0_48], %244 {strides = array<i32>} : memref<2x8x16xf32, #tpu.memory_space<vmem>>, vector<2x8x16xf32>,
    } else {
    }
    return
  }
  func.func @transform_0(%arg0: i32) -> (i32, i32, i32, i32) {
    %c0_i32 = arith.constant 0 : i32
    %c0_i32_0 = arith.constant 0 : i32
    %c0_i32_1 = arith.constant 0 : i32
    %c0_i32_2 = arith.constant 0 : i32
    return %c0_i32, %arg0, %c0_i32_0, %c0_i32_1 : i32, i32, i32, i32
  }
  func.func @transform_1(%arg0: i32) -> (i32, i32, i32, i32) {
    %c1_i32 = arith.constant 1 : i32
    %0 = arith.subi %arg0, %c1_i32 : i32
    %c0_i32 = arith.constant 0 : i32
    %1 = arith.maxsi %0, %c0_i32 : i32
    %c0_i32_0 = arith.constant 0 : i32
    %c0_i32_1 = arith.constant 0 : i32
    %c0_i32_2 = arith.constant 0 : i32
    %c0_i32_3 = arith.constant 0 : i32
    return %1, %c0_i32_0, %c0_i32_1, %c0_i32_2 : i32, i32, i32, i32
  }
  func.func @transform_2(%arg0: i32) -> (i32, i32, i32) {
    %c1_i32 = arith.constant 1 : i32
    %0 = arith.subi %arg0, %c1_i32 : i32
    %c0_i32 = arith.constant 0 : i32
    %1 = arith.maxsi %0, %c0_i32 : i32
    %c0_i32_0 = arith.constant 0 : i32
    %c0_i32_1 = arith.constant 0 : i32
    %c0_i32_2 = arith.constant 0 : i32
    return %1, %c0_i32_0, %c0_i32_1 : i32, i32, i32
  }
  func.func @transform_3(%arg0: i32) -> (i32, i32, i32) {
    %c1_i32 = arith.constant 1 : i32
    %0 = arith.subi %arg0, %c1_i32 : i32
    %c0_i32 = arith.constant 0 : i32
    %1 = arith.maxsi %0, %c0_i32 : i32
    %c0_i32_0 = arith.constant 0 : i32
    %c0_i32_1 = arith.constant 0 : i32
    %c0_i32_2 = arith.constant 0 : i32
    return %1, %c0_i32_0, %c0_i32_1 : i32, i32, i32
  }
  func.func @transform_4(%arg0: i32) -> (i32, i32, i32) {
    %c1_i32 = arith.constant 1 : i32
    %0 = arith.subi %arg0, %c1_i32 : i32
    %c0_i32 = arith.constant 0 : i32
    %1 = arith.maxsi %0, %c0_i32 : i32
    %c0_i32_0 = arith.constant 0 : i32
    %c0_i32_1 = arith.constant 0 : i32
    %c0_i32_2 = arith.constant 0 : i32
    return %1, %c0_i32_0, %c0_i32_1 : i32, i32, i32
  }
  func.func @transform_5(%arg0: i32) -> (i32, i32, i32, i32) {
    %c0_i32 = arith.constant 0 : i32
    %c0_i32_0 = arith.constant 0 : i32
    %c0_i32_1 = arith.constant 0 : i32
    %c0_i32_2 = arith.constant 0 : i32
    return %c0_i32, %arg0, %c0_i32_0, %c0_i32_1 : i32, i32, i32, i32
  }
}

</mosaic_0001>

<llo_original>
// kernel: tpu_custom_call.1
$region0: #{tpu_custom_call.1}
  #allocation0 [shape = 'u32[]', space=smem, size = 0x4, offset = 0x4, fixed_abs, tag = 'smem constant byte address 0x4 - core index']
  #allocation1 [shape = 'u32[144,128]{1,0:T(1,128)}', space=vmem, size = 0x12000, scoped, tag = 'internal scratch']
  #allocation2 [shape = 'f32[2,8,16]{2,1,0:T(8,128)}', space=vmem, size = 0x2000, scoped, tag = 'scratch operand']
  %s0 = inlined_call_operand.hbm [shape: f32[2,4,8,16], index: 0, kind: input, shape index: {}]
  %s1 = inlined_call_operand.vmem [shape: f32[3,3,8,8], index: 1, kind: input, shape index: {}]
  %s2 = inlined_call_operand.vmem [shape: f32[3,8,1], index: 2, kind: input, shape index: {}]
  %s3 = inlined_call_operand.vmem [shape: f32[3,8,1], index: 3, kind: input, shape index: {}]
  %s4 = inlined_call_operand.vmem [shape: f32[3,8,1], index: 4, kind: input, shape index: {}]
  %s5 = inlined_call_operand.hbm [shape: f32[2,4,8,16], index: 5, kind: output, shape index: {}]
  %s6 = sld [smem:[#allocation0]]
  $region65: #{tpu_custom_call.1} parent=0
    _
  %s8 = ssub.s32 1, %s6
  %s9 = scalar_select 0, %s8, %s6
  $region1: #{tpu_custom_call.1} parent=0
    #allocation3 [shape = 'u8[16384]{0}', space=vmem, size = 0x4000, scoped, tag = 'input window, operand 0']
    #allocation4 [shape = 's32[2]{0}', space=sflag, size = 0x8, scoped, tag = 'scoped memory for tpu_custom_call.1']
    #allocation5 [shape = 's32[2]{0}', space=sflag, size = 0x8, scoped, tag = 'scoped memory for tpu_custom_call.1']
    #allocation6 [shape = 'u8[16384]{0}', space=vmem, size = 0x4000, scoped, tag = 'output window, operand 0']
    %10 = vsyncpa [#allocation4], 0
    %s11 = scalar_lea.sflag [#allocation4], 1
    %12 = vsyncpa %s11, 0
    %13 = vsyncpa [#allocation5], 0
    %s14 = scalar_lea.sflag [#allocation5], 1
    %15 = vsyncpa %s14, 0
    loop: start=0, step=1, limit=6
    $region2: #{tpu_custom_call.1} parent=1 // loop_pre_header
      _
    $region3: #{tpu_custom_call.1} parent=1 // loop_header
      %s17 = sphi 0, %s21
      %p18 = scmp.ge.s32.totalorder %s17, 6
      %s27 = sphi 0, %s29
      %s30 = sphi 0, %s27
      %s31 = sphi 0, %s30
      %s47 = sphi 0, %s31
      %s59 = sphi 0, %s61
      %s62 = sphi 0, %s59
      %s63 = sphi 0, %s62
      %s79 = sphi 0, %s63
      %s91 = sphi 0, %s93
      %s94 = sphi 0, %s91
      %s95 = sphi 0, %s94
      %s111 = sphi 0, %s95
      %s123 = sphi 0, %s125
      %s126 = sphi 0, %s123
      %s127 = sphi 0, %s126
      %s143 = sphi 0, %s127
      %s155 = sphi 0, %s157
      %s158 = sphi 0, %s155
      %s159 = sphi 0, %s158
      %s175 = sphi 0, %s159
      %s181 = sphi 0, %s183
      %s184 = sphi 0, %s181
      %s185 = sphi 0, %s184
      %s201 = sphi 0, %s185
    $region4: #{tpu_custom_call.1} parent=1 // loop_header_branch
      %20 = sbr.rel (%p18) target = $region8
    $region5: #{tpu_custom_call.1} parent=1 // loop_body
      %s22 = ssub.s32 %s17, 1
      %s23 = ssub.s32 %s17, 2
      %s24 = sadd.s32 %s17, 1
      %s25 = ssub.s32 %s17, %s24
      %p26 = scmp.eq.s32.totalorder %s25, 0
      %s28 = sadd.s32 %s27, 1
      %s29 = scalar_select %p26, %s27, %s28
      %p32 = pneg %p26
      %p33 = scmp.eq.s32.totalorder %s17, 3
      %p34 = por %p32, %p33
      %p35 = scmp.ne.s32.totalorder %s27, %s30
      %p36 = scmp.eq.s32.totalorder %s17, 0
      %p37 = por %p35, %p36
      %p38 = scmp.ne.s32.totalorder %s27, %s30
      %p39 = scmp.eq.s32.totalorder %s22, 3
      %p40 = por %p38, %p39
      %p41 = scmp.ne.s32.totalorder %s30, %s31
      %p42 = scmp.eq.s32.totalorder %s22, 0
      %p43 = por %p41, %p42
      %p44 = scmp.ne.s32.totalorder %s30, %s31
      %p45 = scmp.eq.s32.totalorder %s23, 3
      %p46 = por %p44, %p45
      %p48 = scmp.ne.s32.totalorder %s31, %s47
      %p49 = scmp.eq.s32.totalorder %s23, 0
      %p50 = por %p48, %p49
      %s51 = ssub.s32 %s17, 1
      %p52 = scmp.gt.s32.totalorder %s51, 0
      %s53 = scalar_select %p52, %s51, 0
      %s54 = ssub.s32 %s24, 1
      %p55 = scmp.gt.s32.totalorder %s54, 0
      %s56 = scalar_select %p55, %s54, 0
      %s57 = ssub.s32 %s53, %s56
      %p58 = scmp.eq.s32.totalorder %s57, 0
      %s60 = sadd.s32 %s59, 1
      %s61 = scalar_select %p58, %s59, %s60
      %p64 = pneg %p58
      %p65 = scmp.eq.s32.totalorder %s17, 3
      %p66 = por %p64, %p65
      %p67 = scmp.ne.s32.totalorder %s59, %s62
      %p68 = scmp.eq.s32.totalorder %s17, 0
      %p69 = por %p67, %p68
      %p70 = scmp.ne.s32.totalorder %s59, %s62
      %p71 = scmp.eq.s32.totalorder %s22, 3
      %p72 = por %p70, %p71
      %p73 = scmp.ne.s32.totalorder %s62, %s63
      %p74 = scmp.eq.s32.totalorder %s22, 0
      %p75 = por %p73, %p74
      %p76 = scmp.ne.s32.totalorder %s62, %s63
      %p77 = scmp.eq.s32.totalorder %s23, 3
      %p78 = por %p76, %p77
      %p80 = scmp.ne.s32.totalorder %s63, %s79
      %p81 = scmp.eq.s32.totalorder %s23, 0
      %p82 = por %p80, %p81
      %s83 = ssub.s32 %s17, 1
      %p84 = scmp.gt.s32.totalorder %s83, 0
      %s85 = scalar_select %p84, %s83, 0
      %s86 = ssub.s32 %s24, 1
      %p87 = scmp.gt.s32.totalorder %s86, 0
      %s88 = scalar_select %p87, %s86, 0
      %s89 = ssub.s32 %s85, %s88
      %p90 = scmp.eq.s32.totalorder %s89, 0
      %s92 = sadd.s32 %s91, 1
      %s93 = scalar_select %p90, %s91, %s92
      %p96 = pneg %p90
      %p97 = scmp.eq.s32.totalorder %s17, 3
      %p98 = por %p96, %p97
      %p99 = scmp.ne.s32.totalorder %s91, %s94
      %p100 = scmp.eq.s32.totalorder %s17, 0
      %p101 = por %p99, %p100
      %p102 = scmp.ne.s32.totalorder %s91, %s94
      %p103 = scmp.eq.s32.totalorder %s22, 3
      %p104 = por %p102, %p103
      %p105 = scmp.ne.s32.totalorder %s94, %s95
      %p106 = scmp.eq.s32.totalorder %s22, 0
      %p107 = por %p105, %p106
      %p108 = scmp.ne.s32.totalorder %s94, %s95
      %p109 = scmp.eq.s32.totalorder %s23, 3
      %p110 = por %p108, %p109
      %p112 = scmp.ne.s32.totalorder %s95, %s111
      %p113 = scmp.eq.s32.totalorder %s23, 0
      %p114 = por %p112, %p113
      %s115 = ssub.s32 %s17, 1
      %p116 = scmp.gt.s32.totalorder %s115, 0
      %s117 = scalar_select %p116, %s115, 0
      %s118 = ssub.s32 %s24, 1
      %p119 = scmp.gt.s32.totalorder %s118, 0
      %s120 = scalar_select %p119, %s118, 0
      %s121 = ssub.s32 %s117, %s120
      %p122 = scmp.eq.s32.totalorder %s121, 0
      %s124 = sadd.s32 %s123, 1
      %s125 = scalar_select %p122, %s123, %s124
      %p128 = pneg %p122
      %p129 = scmp.eq.s32.totalorder %s17, 3
      %p130 = por %p128, %p129
      %p131 = scmp.ne.s32.totalorder %s123, %s126
      %p132 = scmp.eq.s32.totalorder %s17, 0
      %p133 = por %p131, %p132
      %p134 = scmp.ne.s32.totalorder %s123, %s126
      %p135 = scmp.eq.s32.totalorder %s22, 3
      %p136 = por %p134, %p135
      %p137 = scmp.ne.s32.totalorder %s126, %s127
      %p138 = scmp.eq.s32.totalorder %s22, 0
      %p139 = por %p137, %p138
      %p140 = scmp.ne.s32.totalorder %s126, %s127
      %p141 = scmp.eq.s32.totalorder %s23, 3
      %p142 = por %p140, %p141
      %p144 = scmp.ne.s32.totalorder %s127, %s143
      %p145 = scmp.eq.s32.totalorder %s23, 0
      %p146 = por %p144, %p145
      %s147 = ssub.s32 %s17, 1
      %p148 = scmp.gt.s32.totalorder %s147, 0
      %s149 = scalar_select %p148, %s147, 0
      %s150 = ssub.s32 %s24, 1
      %p151 = scmp.gt.s32.totalorder %s150, 0
      %s152 = scalar_select %p151, %s150, 0
      %s153 = ssub.s32 %s149, %s152
      %p154 = scmp.eq.s32.totalorder %s153, 0
      %s156 = sadd.s32 %s155, 1
      %s157 = scalar_select %p154, %s155, %s156
      %p160 = pneg %p154
      %p161 = scmp.eq.s32.totalorder %s17, 3
      %p162 = por %p160, %p161
      %p163 = scmp.ne.s32.totalorder %s155, %s158
      %p164 = scmp.eq.s32.totalorder %s17, 0
      %p165 = por %p163, %p164
      %p166 = scmp.ne.s32.totalorder %s155, %s158
      %p167 = scmp.eq.s32.totalorder %s22, 3
      %p168 = por %p166, %p167
      %p169 = scmp.ne.s32.totalorder %s158, %s159
      %p170 = scmp.eq.s32.totalorder %s22, 0
      %p171 = por %p169, %p170
      %p172 = scmp.ne.s32.totalorder %s158, %s159
      %p173 = scmp.eq.s32.totalorder %s23, 3
      %p174 = por %p172, %p173
      %p176 = scmp.ne.s32.totalorder %s159, %s175
      %p177 = scmp.eq.s32.totalorder %s23, 0
      %p178 = por %p176, %p177
      %s179 = ssub.s32 %s17, %s24
      %p180 = scmp.eq.s32.totalorder %s179, 0
      %s182 = sadd.s32 %s181, 1
      %s183 = scalar_select %p180, %s181, %s182
      %p186 = pneg %p180
      %p187 = scmp.eq.s32.totalorder %s17, 3
      %p188 = por %p186, %p187
      %p189 = scmp.ne.s32.totalorder %s181, %s184
      %p190 = scmp.eq.s32.totalorder %s17, 0
      %p191 = por %p189, %p190
      %p192 = scmp.ne.s32.totalorder %s181, %s184
      %p193 = scmp.eq.s32.totalorder %s22, 3
      %p194 = por %p192, %p193
      %p195 = scmp.ne.s32.totalorder %s184, %s185
      %p196 = scmp.eq.s32.totalorder %s22, 0
      %p197 = por %p195, %p196
      %p198 = scmp.ne.s32.totalorder %s184, %s185
      %p199 = scmp.eq.s32.totalorder %s23, 3
      %p200 = por %p198, %p199
      %p202 = scmp.ne.s32.totalorder %s185, %s201
      %p203 = scmp.eq.s32.totalorder %s23, 0
      %p204 = por %p202, %p203
      %p205 = scmp.le.s32.totalorder 1, %s17
      %p206 = scmp.lt.s32.totalorder %s17, 5
      %p207 = pnand %p205, %p206
      %p208 = pneg %p207
      // Predicated region
      $region9: #{tpu_custom_call.1} parent=5 // pred_check
        _
      $region10: #{tpu_custom_call.1} parent=5 // pred_check_branch
        %210 = sbr.rel (%p207) target = $region12
      $region11: #{tpu_custom_call.1} parent=5 // pred_region
        %s211 = ssub.s32 %s17, 1
      $region12: #{tpu_custom_call.1} parent=5 // pred_fallthru
        _
      %p212 = scmp.lt.s32.totalorder %s17, 4
      // Predicated region
      $region13: #{tpu_custom_call.1} parent=5 // pred_check
        %p213 = pneg %p212
      $region14: #{tpu_custom_call.1} parent=5 // pred_check_branch
        %215 = sbr.rel (%p213) target = $region16
      $region15: #{tpu_custom_call.1} parent=5 // pred_region
        // Predicated region
        $region17: #{tpu_custom_call.1} parent=15 // pred_check
          %p216 = pneg %p37
        $region18: #{tpu_custom_call.1} parent=15 // pred_check_branch
          %218 = sbr.rel (%p216) target = $region20
        $region19: #{tpu_custom_call.1} parent=15 // pred_region
          %s219 = sand.u32 %s27, 1
          %s220 = scalar_lea.sflag [#allocation4], %s219
          %s221 = sand.u32 %s27, 1
          %s222 = smul.addr %s221, 16
          %s223 = scalar_lea.vmem [#allocation3], %s222
          %s225 = ssub.s32 256, 256
          %226 = vsyncadd %s220, %s225
          %s227 = smul.addr %s17, 128
          %s228 = scalar_lea.hbm %s0, %s227
          %s229 = sshll.u32 %s223, 4
          %s230 = int_to_ptr.vmem [resolvable:$true] %s229
          %235 = dma.hbm_to_vmem [thread:$0]  %s228, 256, %s230, %s220, 512, 128, 8
        $region20: #{tpu_custom_call.1} parent=15 // pred_fallthru
          _
        // Predicated region
        $region21: #{tpu_custom_call.1} parent=15 // pred_check
          %p236 = pneg %p69
        $region22: #{tpu_custom_call.1} parent=15 // pred_check_branch
          %238 = sbr.rel (%p236) target = $region24
        $region23: #{tpu_custom_call.1} parent=15 // pred_region
          %s239 = ssub.s32 %s17, 1
          %p240 = scmp.gt.s32.totalorder %s239, 0
          %s241 = scalar_select %p240, %s239, 0
          %p242 = scmp.lt.s32.totalorder %s241, 2
          %s243 = scalar_select %p242, %s241, 2
          %s244 = smul.addr %s243, 3
          %s245 = smul.addr %s244, 8
          %s246 = scalar_lea.vmem %s1, %s245
          %s247 = ssub.s32 %s17, 1
          %p248 = scmp.gt.s32.totalorder %s247, 0
          %s249 = scalar_select %p248, %s247, 0
        $region24: #{tpu_custom_call.1} parent=15 // pred_fallthru
          _
        // Predicated region
        $region25: #{tpu_custom_call.1} parent=15 // pred_check
          %p250 = pneg %p101
        $region26: #{tpu_custom_call.1} parent=15 // pred_check_branch
          %252 = sbr.rel (%p250) target = $region28
        $region27: #{tpu_custom_call.1} parent=15 // pred_region
          %s253 = ssub.s32 %s17, 1
          %p254 = scmp.gt.s32.totalorder %s253, 0
          %s255 = scalar_select %p254, %s253, 0
          %p256 = scmp.lt.s32.totalorder %s255, 2
          %s257 = scalar_select %p256, %s255, 2
          %s258 = smul.addr %s257, 8
          %s259 = scalar_lea.vmem %s2, %s258
          %s260 = ssub.s32 %s17, 1
          %p261 = scmp.gt.s32.totalorder %s260, 0
          %s262 = scalar_select %p261, %s260, 0
        $region28: #{tpu_custom_call.1} parent=15 // pred_fallthru
          _
        // Predicated region
        $region29: #{tpu_custom_call.1} parent=15 // pred_check
          %p263 = pneg %p133
        $region30: #{tpu_custom_call.1} parent=15 // pred_check_branch
          %265 = sbr.rel (%p263) target = $region32
        $region31: #{tpu_custom_call.1} parent=15 // pred_region
          %s266 = ssub.s32 %s17, 1
          %p267 = scmp.gt.s32.totalorder %s266, 0
          %s268 = scalar_select %p267, %s266, 0
          %p269 = scmp.lt.s32.totalorder %s268, 2
          %s270 = scalar_select %p269, %s268, 2
          %s271 = smul.addr %s270, 8
          %s272 = scalar_lea.vmem %s3, %s271
          %s273 = ssub.s32 %s17, 1
          %p274 = scmp.gt.s32.totalorder %s273, 0
          %s275 = scalar_select %p274, %s273, 0
        $region32: #{tpu_custom_call.1} parent=15 // pred_fallthru
          _
        // Predicated region
        $region33: #{tpu_custom_call.1} parent=15 // pred_check
          %p276 = pneg %p165
        $region34: #{tpu_custom_call.1} parent=15 // pred_check_branch
          %278 = sbr.rel (%p276) target = $region36
        $region35: #{tpu_custom_call.1} parent=15 // pred_region
          %s279 = ssub.s32 %s17, 1
          %p280 = scmp.gt.s32.totalorder %s279, 0
          %s281 = scalar_select %p280, %s279, 0
          %p282 = scmp.lt.s32.totalorder %s281, 2
          %s283 = scalar_select %p282, %s281, 2
          %s284 = smul.addr %s283, 8
          %s285 = scalar_lea.vmem %s4, %s284
          %s286 = ssub.s32 %s17, 1
          %p287 = scmp.gt.s32.totalorder %s286, 0
          %s288 = scalar_select %p287, %s286, 0
        $region36: #{tpu_custom_call.1} parent=15 // pred_fallthru
          _
      $region16: #{tpu_custom_call.1} parent=5 // pred_fallthru
        _
      %p289 = scmp.le.s32.totalorder 1, %s17
      %p290 = scmp.lt.s32.totalorder %s17, 5
      %p291 = pnand %p289, %p290
      %p292 = pneg %p291
      // Predicated region
      $region37: #{tpu_custom_call.1} parent=5 // pred_check
        _
      $region38: #{tpu_custom_call.1} parent=5 // pred_check_branch
        %294 = sbr.rel (%p291) target = $region40
      $region39: #{tpu_custom_call.1} parent=5 // pred_region
        %s295 = ssub.s32 %s17, 1
        %s296 = sand.u32 %s30, 1
        %s297 = scalar_lea.sflag [#allocation4], %s296
        %s298 = sand.u32 %s30, 1
        %s299 = smul.addr %s298, 16
        %s300 = scalar_lea.vmem [#allocation3], %s299
        // Predicated region
        $region41: #{tpu_custom_call.1} parent=39 // pred_check
          %p301 = pneg %p43
        $region42: #{tpu_custom_call.1} parent=39 // pred_check_branch
          %303 = sbr.rel (%p301) target = $region44
        $region43: #{tpu_custom_call.1} parent=39 // pred_region
          %304 = dma.done %s297, 256
        $region44: #{tpu_custom_call.1} parent=39 // pred_fallthru
          _
        %s305 = sand.u32 %s30, 1
        %s306 = scalar_lea.sflag [#allocation4], %s305
        %s307 = sand.u32 %s30, 1
        %s308 = smul.addr %s307, 16
        %s309 = scalar_lea.vmem [#allocation3], %s308
        %p310 = pneg %p43
        %p311 = pneg %p40
        %s312 = ssub.s32 %s22, 1
        %p313 = scmp.gt.s32.totalorder %s312, 0
        %s314 = scalar_select %p313, %s312, 0
        %p315 = scmp.lt.s32.totalorder %s314, 2
        %s316 = scalar_select %p315, %s314, 2
        %s317 = smul.addr %s316, 3
        %s318 = smul.addr %s317, 8
        %s319 = scalar_lea.vmem %s1, %s318
        %p320 = pneg %p75
        %p321 = pneg %p72
        %s322 = ssub.s32 %s22, 1
        %p323 = scmp.gt.s32.totalorder %s322, 0
        %s324 = scalar_select %p323, %s322, 0
        %p325 = scmp.lt.s32.totalorder %s324, 2
        %s326 = scalar_select %p325, %s324, 2
        %s327 = smul.addr %s326, 8
        %s328 = scalar_lea.vmem %s2, %s327
        %p329 = pneg %p107
        %p330 = pneg %p104
        %s331 = ssub.s32 %s22, 1
        %p332 = scmp.gt.s32.totalorder %s331, 0
        %s333 = scalar_select %p332, %s331, 0
        %p334 = scmp.lt.s32.totalorder %s333, 2
        %s335 = scalar_select %p334, %s333, 2
        %s336 = smul.addr %s335, 8
        %s337 = scalar_lea.vmem %s3, %s336
        %p338 = pneg %p139
        %p339 = pneg %p136
        %s340 = ssub.s32 %s22, 1
        %p341 = scmp.gt.s32.totalorder %s340, 0
        %s342 = scalar_select %p341, %s340, 0
        %p343 = scmp.lt.s32.totalorder %s342, 2
        %s344 = scalar_select %p343, %s342, 2
        %s345 = smul.addr %s344, 8
        %s346 = scalar_lea.vmem %s4, %s345
        %p347 = pneg %p171
        %p348 = pneg %p168
        %p349 = pneg %p197
        %p350 = pneg %p194
        %s351 = sand.u32 %s184, 1
        %s352 = scalar_lea.sflag [#allocation5], %s351
        %s353 = sand.u32 %s184, 1
        %s354 = smul.addr %s353, 16
        %s355 = scalar_lea.vmem [#allocation6], %s354
        %s356 = ssub.s32 %s22, 1
        %p357 = scmp.gt.s32.totalorder %s356, 0
        %s358 = scalar_select %p357, %s356, 0
        %p359 = scmp.lt.s32.totalorder %s358, 2
        %s360 = scalar_select %p359, %s358, 2
        %s361 = smul.addr %s360, 3
        %s362 = smul.addr %s361, 8
        %s363 = scalar_lea.vmem %s1, %s362
        %s364 = ssub.s32 %s22, 1
        %p365 = scmp.gt.s32.totalorder %s364, 0
        %s366 = scalar_select %p365, %s364, 0
        %s367 = ssub.s32 %s22, 1
        %p368 = scmp.gt.s32.totalorder %s367, 0
        %s369 = scalar_select %p368, %s367, 0
        %p370 = scmp.lt.s32.totalorder %s369, 2
        %s371 = scalar_select %p370, %s369, 2
        %s372 = smul.addr %s371, 8
        %s373 = scalar_lea.vmem %s2, %s372
        %s374 = ssub.s32 %s22, 1
        %p375 = scmp.gt.s32.totalorder %s374, 0
        %s376 = scalar_select %p375, %s374, 0
        %s377 = ssub.s32 %s22, 1
        %p378 = scmp.gt.s32.totalorder %s377, 0
        %s379 = scalar_select %p378, %s377, 0
        %p380 = scmp.lt.s32.totalorder %s379, 2
        %s381 = scalar_select %p380, %s379, 2
        %s382 = smul.addr %s381, 8
        %s383 = scalar_lea.vmem %s3, %s382
        %s384 = ssub.s32 %s22, 1
        %p385 = scmp.gt.s32.totalorder %s384, 0
        %s386 = scalar_select %p385, %s384, 0
        %s387 = ssub.s32 %s22, 1
        %p388 = scmp.gt.s32.totalorder %s387, 0
        %s389 = scalar_select %p388, %s387, 0
        %p390 = scmp.lt.s32.totalorder %s389, 2
        %s391 = scalar_select %p390, %s389, 2
        %s392 = smul.addr %s391, 8
        %s393 = scalar_lea.vmem %s4, %s392
        %s394 = ssub.s32 %s22, 1
        %p395 = scmp.gt.s32.totalorder %s394, 0
        %s396 = scalar_select %p395, %s394, 0
        %p397 = scmp.eq.s32.totalorder %s22, 0
        // Predicated region
        $region45: #{tpu_custom_call.1} parent=39 // pred_check
          %p398 = pneg %p397
        $region46: #{tpu_custom_call.1} parent=39 // pred_check_branch
          %400 = sbr.rel (%p398) target = $region48
        $region47: #{tpu_custom_call.1} parent=39 // pred_region
          %v401 = vld [vmem:[%s300] sm:$0xff]
          %v402 = vld [vmem:[%s300 + $0x8] sm:$0xff]
          %vm403 = vcmask 130048
          %404 = vst.msk [vmem:[%s355] sm:$0xff] %vm403, %v401
          %405 = vst.msk [vmem:[%s355 + $0x8] sm:$0xff] %vm403, %v402
          %406 = vst.msk [vmem:[#allocation2] sm:$0xff] %vm403, 0.0
          %407 = vst.msk [vmem:[#allocation2 + $0x8] sm:$0xff] %vm403, 0.0
        $region48: #{tpu_custom_call.1} parent=39 // pred_fallthru
          _
        %p408 = scmp.gt.s32.totalorder %s22, 0
        // Predicated region
        $region49: #{tpu_custom_call.1} parent=39 // pred_check
          %p409 = pneg %p408
        $region50: #{tpu_custom_call.1} parent=39 // pred_check_branch
          %411 = sbr.rel (%p409) target = $region52
        $region51: #{tpu_custom_call.1} parent=39 // pred_region
          %v412 = vld [vmem:[%s300] sm:$0xff]
          %v413 = vld [vmem:[%s300 + $0x8] sm:$0xff]
          %v414 = vld [vmem:[#allocation2] sm:$0xff]
          %v415 = vld [vmem:[#allocation2 + $0x8] sm:$0xff]
          %v416 = vadd.f32 %v412, %v414
          %v417 = vadd.f32 %v413, %v415
          %v418 = vlaneseq
          %v419 = vand.u32 %v418, 127
          %vm420 = vcmask 1047680
          %421 = vrot.lane.b32.xlu0 %v416, 16
          %v422 = vpop.permute.xlu0 %421
          %v423 = vsel %vm420, %v422, %v416
          %424 = vrot.lane.b32.xlu0 %v417, 16
          %v425 = vpop.permute.xlu0 %424
          %v426 = vsel %vm420, %v425, %v417
          %427 = vrot.lane.b32.xlu0 %v423, 16
          %v428 = vpop.permute.xlu0 %427
          %429 = vrot.lane.b32.xlu0 %v426, 16
          %v430 = vpop.permute.xlu0 %429
          %v431 = vsel %vm420, %v428, %v416
          %v432 = vsel %vm420, %v430, %v417
          %v433 = vadd.s32 %v419, 4294967294
          %vm434 = vcmp.ge.s32.totalorder %v433, 0
          %vm435 = vcmp.lt.s32.totalorder %v433, 16
          %vm436 = vmand %vm434, %vm435
          %439 = vrot.lane.b32.xlu0 %v431, 114
          %v440 = vpop.permute.xlu0 %439
          %441 = vrot.lane.b32.xlu0 %v432, 114
          %v442 = vpop.permute.xlu0 %441
          %v445 = vsel %vm436, %v440, 0.0
          %v446 = vsel %vm436, %v442, 0.0
          %v447 = vld [vmem:[%s363] sm:$0xff]
          %449 = vset.pattern.permute.xlu0 0
          %450 = vperm.xlu0 %449, %v447
          %v451 = vpop.permute.xlu0 %450
          %v453 = vlaneseq
          %v454 = vshrl.u32 %v453, 7
          %v455 = vsub.s32 0, %v454
          %v456 = vrot.slane %v445, %v455
          %v457 = vlaneseq
          %v458 = vshrl.u32 %v457, 7
          %v459 = vsub.s32 0, %v458
          %v460 = vrot.slane %v446, %v459
          %v461 = vmul.f32 %v451, %v456
          %v462 = vmul.f32 %v451, %v460
          %v463 = vadd.f32 %v461, 0.0
          %v464 = vadd.f32 %v462, 0.0
          %465 = vset.pattern.permute.xlu0 1
          %466 = vperm.xlu0 %465, %v447
          %v467 = vpop.permute.xlu0 %466
          %v469 = vlaneseq
          %v470 = vshrl.u32 %v469, 7
          %v471 = vsub.s32 1, %v470
          %v472 = vrot.slane %v445, %v471
          %v473 = vlaneseq
          %v474 = vshrl.u32 %v473, 7
          %v475 = vsub.s32 1, %v474
          %v476 = vrot.slane %v446, %v475
          %v477 = vmul.f32 %v467, %v472
          %v478 = vmul.f32 %v467, %v476
          %v479 = vadd.f32 %v463, %v477
          %v480 = vadd.f32 %v464, %v478
          %481 = vset.pattern.permute.xlu0 2
          %482 = vperm.xlu0 %481, %v447
          %v483 = vpop.permute.xlu0 %482
          %v485 = vlaneseq
          %v486 = vshrl.u32 %v485, 7
          %v487 = vsub.s32 2, %v486
          %v488 = vrot.slane %v445, %v487
          %v489 = vlaneseq
          %v490 = vshrl.u32 %v489, 7
          %v491 = vsub.s32 2, %v490
          %v492 = vrot.slane %v446, %v491
          %v493 = vmul.f32 %v483, %v488
          %v494 = vmul.f32 %v483, %v492
          %v495 = vadd.f32 %v479, %v493
          %v496 = vadd.f32 %v480, %v494
          %497 = vset.pattern.permute.xlu0 3
          %498 = vperm.xlu0 %497, %v447
          %v499 = vpop.permute.xlu0 %498
          %v501 = vlaneseq
          %v502 = vshrl.u32 %v501, 7
          %v503 = vsub.s32 3, %v502
          %v504 = vrot.slane %v445, %v503
          %v505 = vlaneseq
          %v506 = vshrl.u32 %v505, 7
          %v507 = vsub.s32 3, %v506
          %v508 = vrot.slane %v446, %v507
          %v509 = vmul.f32 %v499, %v504
          %v510 = vmul.f32 %v499, %v508
          %v511 = vadd.f32 %v495, %v509
          %v512 = vadd.f32 %v496, %v510
          %513 = vset.pattern.permute.xlu0 4
          %514 = vperm.xlu0 %513, %v447
          %v515 = vpop.permute.xlu0 %514
          %v517 = vlaneseq
          %v518 = vshrl.u32 %v517, 7
          %v519 = vsub.s32 4, %v518
          %v520 = vrot.slane %v445, %v519
          %v521 = vlaneseq
          %v522 = vshrl.u32 %v521, 7
          %v523 = vsub.s32 4, %v522
          %v524 = vrot.slane %v446, %v523
          %v525 = vmul.f32 %v515, %v520
          %v526 = vmul.f32 %v515, %v524
          %v527 = vadd.f32 %v511, %v525
          %v528 = vadd.f32 %v512, %v526
          %529 = vset.pattern.permute.xlu0 5
          %530 = vperm.xlu0 %529, %v447
          %v531 = vpop.permute.xlu0 %530
          %v533 = vlaneseq
          %v534 = vshrl.u32 %v533, 7
          %v535 = vsub.s32 5, %v534
          %v536 = vrot.slane %v445, %v535
          %v537 = vlaneseq
          %v538 = vshrl.u32 %v537, 7
          %v539 = vsub.s32 5, %v538
          %v540 = vrot.slane %v446, %v539
          %v541 = vmul.f32 %v531, %v536
          %v542 = vmul.f32 %v531, %v540
          %v543 = vadd.f32 %v527, %v541
          %v544 = vadd.f32 %v528, %v542
          %545 = vset.pattern.permute.xlu0 6
          %546 = vperm.xlu0 %545, %v447
          %v547 = vpop.permute.xlu0 %546
          %v549 = vlaneseq
          %v550 = vshrl.u32 %v549, 7
          %v551 = vsub.s32 6, %v550
          %v552 = vrot.slane %v445, %v551
          %v553 = vlaneseq
          %v554 = vshrl.u32 %v553, 7
          %v555 = vsub.s32 6, %v554
          %v556 = vrot.slane %v446, %v555
          %v557 = vmul.f32 %v547, %v552
          %v558 = vmul.f32 %v547, %v556
          %v559 = vadd.f32 %v543, %v557
          %v560 = vadd.f32 %v544, %v558
          %561 = vset.pattern.permute.xlu0 7
          %562 = vperm.xlu0 %561, %v447
          %v563 = vpop.permute.xlu0 %562
          %v565 = vlaneseq
          %v566 = vshrl.u32 %v565, 7
          %v567 = vsub.s32 7, %v566
          %v568 = vrot.slane %v445, %v567
          %v569 = vlaneseq
          %v570 = vshrl.u32 %v569, 7
          %v571 = vsub.s32 7, %v570
          %v572 = vrot.slane %v446, %v571
          %v573 = vmul.f32 %v563, %v568
          %v574 = vmul.f32 %v563, %v572
          %v575 = vadd.f32 %v559, %v573
          %v576 = vadd.f32 %v560, %v574
          %s577 = scalar_lea.vmem %s363, 8
          %v578 = vld [vmem:[%s577] sm:$0xff]
          %580 = vset.pattern.permute.xlu0 0
          %581 = vperm.xlu0 %580, %v578
          %v582 = vpop.permute.xlu0 %581
          %v584 = vlaneseq
          %v585 = vshrl.u32 %v584, 7
          %v586 = vsub.s32 0, %v585
          %v587 = vrot.slane %v416, %v586
          %v588 = vlaneseq
          %v589 = vshrl.u32 %v588, 7
          %v590 = vsub.s32 0, %v589
          %v591 = vrot.slane %v417, %v590
          %v592 = vmul.f32 %v582, %v587
          %v593 = vmul.f32 %v582, %v591
          %v594 = vadd.f32 %v575, %v592
          %v595 = vadd.f32 %v576, %v593
          %596 = vset.pattern.permute.xlu0 1
          %597 = vperm.xlu0 %596, %v578
          %v598 = vpop.permute.xlu0 %597
          %v600 = vlaneseq
          %v601 = vshrl.u32 %v600, 7
          %v602 = vsub.s32 1, %v601
          %v603 = vrot.slane %v416, %v602
          %v604 = vlaneseq
          %v605 = vshrl.u32 %v604, 7
          %v606 = vsub.s32 1, %v605
          %v607 = vrot.slane %v417, %v606
          %v608 = vmul.f32 %v598, %v603
          %v609 = vmul.f32 %v598, %v607
          %v610 = vadd.f32 %v594, %v608
          %v611 = vadd.f32 %v595, %v609
          %612 = vset.pattern.permute.xlu0 2
          %613 = vperm.xlu0 %612, %v578
          %v614 = vpop.permute.xlu0 %613
          %v616 = vlaneseq
          %v617 = vshrl.u32 %v616, 7
          %v618 = vsub.s32 2, %v617
          %v619 = vrot.slane %v416, %v618
          %v620 = vlaneseq
          %v621 = vshrl.u32 %v620, 7
          %v622 = vsub.s32 2, %v621
          %v623 = vrot.slane %v417, %v622
          %v624 = vmul.f32 %v614, %v619
          %v625 = vmul.f32 %v614, %v623
          %v626 = vadd.f32 %v610, %v624
          %v627 = vadd.f32 %v611, %v625
          %628 = vset.pattern.permute.xlu0 3
          %629 = vperm.xlu0 %628, %v578
          %v630 = vpop.permute.xlu0 %629
          %v632 = vlaneseq
          %v633 = vshrl.u32 %v632, 7
          %v634 = vsub.s32 3, %v633
          %v635 = vrot.slane %v416, %v634
          %v636 = vlaneseq
          %v637 = vshrl.u32 %v636, 7
          %v638 = vsub.s32 3, %v637
          %v639 = vrot.slane %v417, %v638
          %v640 = vmul.f32 %v630, %v635
          %v641 = vmul.f32 %v630, %v639
          %v642 = vadd.f32 %v626, %v640
          %v643 = vadd.f32 %v627, %v641
          %644 = vset.pattern.permute.xlu0 4
          %645 = vperm.xlu0 %644, %v578
          %v646 = vpop.permute.xlu0 %645
          %v648 = vlaneseq
          %v649 = vshrl.u32 %v648, 7
          %v650 = vsub.s32 4, %v649
          %v651 = vrot.slane %v416, %v650
          %v652 = vlaneseq
          %v653 = vshrl.u32 %v652, 7
          %v654 = vsub.s32 4, %v653
          %v655 = vrot.slane %v417, %v654
          %v656 = vmul.f32 %v646, %v651
          %v657 = vmul.f32 %v646, %v655
          %v658 = vadd.f32 %v642, %v656
          %v659 = vadd.f32 %v643, %v657
          %660 = vset.pattern.permute.xlu0 5
          %661 = vperm.xlu0 %660, %v578
          %v662 = vpop.permute.xlu0 %661
          %v664 = vlaneseq
          %v665 = vshrl.u32 %v664, 7
          %v666 = vsub.s32 5, %v665
          %v667 = vrot.slane %v416, %v666
          %v668 = vlaneseq
          %v669 = vshrl.u32 %v668, 7
          %v670 = vsub.s32 5, %v669
          %v671 = vrot.slane %v417, %v670
          %v672 = vmul.f32 %v662, %v667
          %v673 = vmul.f32 %v662, %v671
          %v674 = vadd.f32 %v658, %v672
          %v675 = vadd.f32 %v659, %v673
          %676 = vset.pattern.permute.xlu0 6
          %677 = vperm.xlu0 %676, %v578
          %v678 = vpop.permute.xlu0 %677
          %v680 = vlaneseq
          %v681 = vshrl.u32 %v680, 7
          %v682 = vsub.s32 6, %v681
          %v683 = vrot.slane %v416, %v682
          %v684 = vlaneseq
          %v685 = vshrl.u32 %v684, 7
          %v686 = vsub.s32 6, %v685
          %v687 = vrot.slane %v417, %v686
          %v688 = vmul.f32 %v678, %v683
          %v689 = vmul.f32 %v678, %v687
          %v690 = vadd.f32 %v674, %v688
          %v691 = vadd.f32 %v675, %v689
          %692 = vset.pattern.permute.xlu0 7
          %693 = vperm.xlu0 %692, %v578
          %v694 = vpop.permute.xlu0 %693
          %v696 = vlaneseq
          %v697 = vshrl.u32 %v696, 7
          %v698 = vsub.s32 7, %v697
          %v699 = vrot.slane %v416, %v698
          %v700 = vlaneseq
          %v701 = vshrl.u32 %v700, 7
          %v702 = vsub.s32 7, %v701
          %v703 = vrot.slane %v417, %v702
          %v704 = vmul.f32 %v694, %v699
          %v705 = vmul.f32 %v694, %v703
          %v706 = vadd.f32 %v690, %v704
          %v707 = vadd.f32 %v691, %v705
          %v708 = vadd.s32 %v419, 2
          %vm709 = vcmp.ge.s32.totalorder %v708, 0
          %vm710 = vcmp.lt.s32.totalorder %v708, 16
          %vm711 = vmand %vm709, %vm710
          %712 = vrot.lane.b32.xlu0 %v431, 126
          %v713 = vpop.permute.xlu0 %712
          %714 = vrot.lane.b32.xlu0 %v432, 126
          %v715 = vpop.permute.xlu0 %714
          %v718 = vsel %vm711, %v713, 0.0
          %v719 = vsel %vm711, %v715, 0.0
          %s720 = scalar_lea.vmem %s363, 16
          %v721 = vld [vmem:[%s720] sm:$0xff]
          %723 = vset.pattern.permute.xlu0 0
          %724 = vperm.xlu0 %723, %v721
          %v725 = vpop.permute.xlu0 %724
          %v727 = vlaneseq
          %v728 = vshrl.u32 %v727, 7
          %v729 = vsub.s32 0, %v728
          %v730 = vrot.slane %v718, %v729
          %v731 = vlaneseq
          %v732 = vshrl.u32 %v731, 7
          %v733 = vsub.s32 0, %v732
          %v734 = vrot.slane %v719, %v733
          %v735 = vmul.f32 %v725, %v730
          %v736 = vmul.f32 %v725, %v734
          %v737 = vadd.f32 %v706, %v735
          %v738 = vadd.f32 %v707, %v736
          %739 = vset.pattern.permute.xlu0 1
          %740 = vperm.xlu0 %739, %v721
          %v741 = vpop.permute.xlu0 %740
          %v743 = vlaneseq
          %v744 = vshrl.u32 %v743, 7
          %v745 = vsub.s32 1, %v744
          %v746 = vrot.slane %v718, %v745
          %v747 = vlaneseq
          %v748 = vshrl.u32 %v747, 7
          %v749 = vsub.s32 1, %v748
          %v750 = vrot.slane %v719, %v749
          %v751 = vmul.f32 %v741, %v746
          %v752 = vmul.f32 %v741, %v750
          %v753 = vadd.f32 %v737, %v751
          %v754 = vadd.f32 %v738, %v752
          %755 = vset.pattern.permute.xlu0 2
          %756 = vperm.xlu0 %755, %v721
          %v757 = vpop.permute.xlu0 %756
          %v759 = vlaneseq
          %v760 = vshrl.u32 %v759, 7
          %v761 = vsub.s32 2, %v760
          %v762 = vrot.slane %v718, %v761
          %v763 = vlaneseq
          %v764 = vshrl.u32 %v763, 7
          %v765 = vsub.s32 2, %v764
          %v766 = vrot.slane %v719, %v765
          %v767 = vmul.f32 %v757, %v762
          %v768 = vmul.f32 %v757, %v766
          %v769 = vadd.f32 %v753, %v767
          %v770 = vadd.f32 %v754, %v768
          %771 = vset.pattern.permute.xlu0 3
          %772 = vperm.xlu0 %771, %v721
          %v773 = vpop.permute.xlu0 %772
          %v775 = vlaneseq
          %v776 = vshrl.u32 %v775, 7
          %v777 = vsub.s32 3, %v776
          %v778 = vrot.slane %v718, %v777
          %v779 = vlaneseq
          %v780 = vshrl.u32 %v779, 7
          %v781 = vsub.s32 3, %v780
          %v782 = vrot.slane %v719, %v781
          %v783 = vmul.f32 %v773, %v778
          %v784 = vmul.f32 %v773, %v782
          %v785 = vadd.f32 %v769, %v783
          %v786 = vadd.f32 %v770, %v784
          %787 = vset.pattern.permute.xlu0 4
          %788 = vperm.xlu0 %787, %v721
          %v789 = vpop.permute.xlu0 %788
          %v791 = vlaneseq
          %v792 = vshrl.u32 %v791, 7
          %v793 = vsub.s32 4, %v792
          %v794 = vrot.slane %v718, %v793
          %v795 = vlaneseq
          %v796 = vshrl.u32 %v795, 7
          %v797 = vsub.s32 4, %v796
          %v798 = vrot.slane %v719, %v797
          %v799 = vmul.f32 %v789, %v794
          %v800 = vmul.f32 %v789, %v798
          %v801 = vadd.f32 %v785, %v799
          %v802 = vadd.f32 %v786, %v800
          %803 = vset.pattern.permute.xlu0 5
          %804 = vperm.xlu0 %803, %v721
          %v805 = vpop.permute.xlu0 %804
          %v807 = vlaneseq
          %v808 = vshrl.u32 %v807, 7
          %v809 = vsub.s32 5, %v808
          %v810 = vrot.slane %v718, %v809
          %v811 = vlaneseq
          %v812 = vshrl.u32 %v811, 7
          %v813 = vsub.s32 5, %v812
          %v814 = vrot.slane %v719, %v813
          %v815 = vmul.f32 %v805, %v810
          %v816 = vmul.f32 %v805, %v814
          %v817 = vadd.f32 %v801, %v815
          %v818 = vadd.f32 %v802, %v816
          %819 = vset.pattern.permute.xlu0 6
          %820 = vperm.xlu0 %819, %v721
          %v821 = vpop.permute.xlu0 %820
          %v823 = vlaneseq
          %v824 = vshrl.u32 %v823, 7
          %v825 = vsub.s32 6, %v824
          %v826 = vrot.slane %v718, %v825
          %v827 = vlaneseq
          %v828 = vshrl.u32 %v827, 7
          %v829 = vsub.s32 6, %v828
          %v830 = vrot.slane %v719, %v829
          %v831 = vmul.f32 %v821, %v826
          %v832 = vmul.f32 %v821, %v830
          %v833 = vadd.f32 %v817, %v831
          %v834 = vadd.f32 %v818, %v832
          %835 = vset.pattern.permute.xlu0 7
          %836 = vperm.xlu0 %835, %v721
          %v837 = vpop.permute.xlu0 %836
          %v839 = vlaneseq
          %v840 = vshrl.u32 %v839, 7
          %v841 = vsub.s32 7, %v840
          %v842 = vrot.slane %v718, %v841
          %v843 = vlaneseq
          %v844 = vshrl.u32 %v843, 7
          %v845 = vsub.s32 7, %v844
          %v846 = vrot.slane %v719, %v845
          %v847 = vmul.f32 %v837, %v842
          %v848 = vmul.f32 %v837, %v846
          %v849 = vadd.f32 %v833, %v847
          %v850 = vadd.f32 %v834, %v848
          %v851 = vld [vmem:[%s373] sm:$0xff]
          %853 = vset.pattern.permute.xlu0 0
          %854 = vperm.xlu0 %853, %v851
          %v855 = vpop.permute.xlu0 %854
          %v857 = vadd.f32 %v849, %v855
          %v858 = vadd.f32 %v850, %v855
          %v859 = vmax.f32 %v857, 0.0
          %v860 = vmax.f32 %v858, 0.0
          %vm861 = vcmask 130048
          %v862 = vsel %vm861, %v859, 0.0
          %v863 = vsel %vm861, %v860, 0.0
          %v864 = vadd.f32 %v862, %v863
          %865 = vadd.xlane.f32.xlu0 %v864
          %v866 = vpop.xlane.xlu0 %865
          %v867 = vrcp.pop 32.0
          %v868 = vmul.f32 %v866, %v867
          %v869 = vsub.f32 %v859, %v868
          %v870 = vsub.f32 %v860, %v868
          %v871 = vmul.f32 %v869, %v869
          %v872 = vmul.f32 %v870, %v870
          %v873 = vsel %vm861, %v871, 0.0
          %v874 = vsel %vm861, %v872, 0.0
          %v875 = vadd.f32 %v873, %v874
          %876 = vadd.xlane.f32.xlu0 %v875
          %v877 = vpop.xlane.xlu0 %876
          %v878 = vmul.f32 %v877, %v867
          %v879 = vadd.f32 %v878, 1e-05
          %v880 = vrsqrt.pop %v879
          %v881 = vmul.f32 %v869, %v880
          %v882 = vmul.f32 %v870, %v880
          %v883 = vld [vmem:[%s383] sm:$0xff]
          %885 = vset.pattern.permute.xlu0 0
          %886 = vperm.xlu0 %885, %v883
          %v887 = vpop.permute.xlu0 %886
          %v889 = vmul.f32 %v881, %v887
          %v890 = vmul.f32 %v882, %v887
          %v891 = vld [vmem:[%s393] sm:$0xff]
          %893 = vset.pattern.permute.xlu0 0
          %894 = vperm.xlu0 %893, %v891
          %v895 = vpop.permute.xlu0 %894
          %v897 = vadd.f32 %v889, %v895
          %v898 = vadd.f32 %v890, %v895
          %899 = vst.msk [vmem:[%s355] sm:$0xff] %vm861, %v897
          %900 = vst.msk [vmem:[%s355 + $0x8] sm:$0xff] %vm861, %v898
          %901 = vst.msk [vmem:[#allocation2] sm:$0xff] %vm861, %v897
          %902 = vst.msk [vmem:[#allocation2 + $0x8] sm:$0xff] %vm861, %v898
        $region52: #{tpu_custom_call.1} parent=39 // pred_fallthru
          _
        %s903 = sand.u32 %s184, 1
        %s904 = scalar_lea.sflag [#allocation5], %s903
        %s905 = sand.u32 %s184, 1
        %s906 = smul.addr %s905, 16
        %s907 = scalar_lea.vmem [#allocation6], %s906
        // Predicated region
        $region53: #{tpu_custom_call.1} parent=39 // pred_check
          %p908 = pneg %p194
        $region54: #{tpu_custom_call.1} parent=39 // pred_check_branch
          %910 = sbr.rel (%p908) target = $region56
        $region55: #{tpu_custom_call.1} parent=39 // pred_region
          %s912 = ssub.s32 256, 256
          %913 = vsyncadd %s904, %s912
          %s914 = smul.addr %s22, 128
          %s915 = scalar_lea.hbm %s5, %s914
          %s916 = sshll.u32 %s907, 4
          %s917 = int_to_ptr.vmem [resolvable:$true] %s916
          %922 = dma.vmem_to_hbm [thread:$0]  %s917, 256, %s915, %s904, 128, 512, 8
        $region56: #{tpu_custom_call.1} parent=39 // pred_fallthru
          _
      $region40: #{tpu_custom_call.1} parent=5 // pred_fallthru
        _
      %p923 = scmp.le.s32.totalorder 2, %s17
      // Predicated region
      $region57: #{tpu_custom_call.1} parent=5 // pred_check
        %p924 = pneg %p923
      $region58: #{tpu_custom_call.1} parent=5 // pred_check_branch
        %926 = sbr.rel (%p924) target = $region60
      $region59: #{tpu_custom_call.1} parent=5 // pred_region
        %s927 = ssub.s32 %s17, 2
        // Predicated region
        $region61: #{tpu_custom_call.1} parent=59 // pred_check
          %p928 = pneg %p200
        $region62: #{tpu_custom_call.1} parent=59 // pred_check_branch
          %930 = sbr.rel (%p928) target = $region64
        $region63: #{tpu_custom_call.1} parent=59 // pred_region
          %s931 = sand.u32 %s185, 1
          %s932 = scalar_lea.sflag [#allocation5], %s931
          %s933 = sand.u32 %s185, 1
          %s934 = smul.addr %s933, 16
          %s935 = scalar_lea.vmem [#allocation6], %s934
          %936 = dma.done %s932, 256
        $region64: #{tpu_custom_call.1} parent=59 // pred_fallthru
          _
      $region60: #{tpu_custom_call.1} parent=5 // pred_fallthru
        _
    $region6: #{tpu_custom_call.1} parent=1 // loop_footer
      %s21 = sadd.s32 1, %s17
    $region7: #{tpu_custom_call.1} parent=1 // loop_footer_branch
      %16 = sbr.rel target = $region3
    $region8: #{tpu_custom_call.1} parent=1 // loop_exit
      _
    %937 = vsyncpa [#allocation4], 1
    %s938 = scalar_lea.sflag [#allocation4], 1
    %939 = vsyncpa %s938, 1
    %940 = vsyncpa [#allocation5], 1
    %s941 = scalar_lea.sflag [#allocation5], 1
    %942 = vsyncpa %s941, 1

</llo_original>
